<compile_context>
chip_gen: v5e
topology: v5e:2x2
jax: 0.10.0
libtpu: 0.0.40
codegen_flags: <defaults>
</compile_context>

<pallas_src>
import functools

import jax
import jax.numpy as jnp
from jax.experimental import pallas as pl
from jax.experimental.pallas import tpu as pltpu

_LANE = 128
_SUBLANE = 8
_DEFAULT_BLOCK_ROWS = 8192   # (8192, 128) f32 block = 4 MiB per input per buffer
_NUM_SPLITS = 2              # v7x has 2 TensorCores; no effect on v5e/v6e


def _mse_kernel(p_ref, t_ref, o_ref, acc_ref, *, total_rows, blocks_per_split,
                fold_final, inv_n):
    c = pl.program_id(0)   # core-split axis ("parallel")
    i = pl.program_id(1)   # sequential reduction axis ("arbitrary")

    @pl.when(i == 0)
    def _():
        acc_ref[...] = jnp.zeros_like(acc_ref)

    block_rows = p_ref.shape[0]
    # Scalar bookkeeping only, from the UNCLAMPED global block id so clamped
    # duplicate blocks fall into the (zeroing) masked path.
    block_start = (c * blocks_per_split + i) * block_rows
    block_is_full = block_start + block_rows <= total_rows

    def _accumulate(dsq):
        # (block_rows, 128) -> (block_rows//8, 8, 128) is layout-free; the sum
        # over the leading axis is pure VPU adds into one vreg-shaped accumulator.
        acc_ref[...] += jnp.sum(
            dsq.reshape(block_rows // _SUBLANE, _SUBLANE, _LANE), axis=0)

    # Hot path (every interior block): 3 VALU ops per vreg, no mask.
    @pl.when(block_is_full)
    def _():
        d = p_ref[...].astype(jnp.float32) - t_ref[...].astype(jnp.float32)
        _accumulate(d * d)

    # Masked path: only the ragged last block and clamped duplicate blocks.
    @pl.when(jnp.logical_not(block_is_full))
    def _():
        rows_left = total_rows - block_start          # <= 0 for clamped dupes
        row = jax.lax.broadcasted_iota(jnp.int32, (block_rows, _LANE), 0)
        valid = row < rows_left
        d = p_ref[...].astype(jnp.float32) - t_ref[...].astype(jnp.float32)
        _accumulate(jnp.where(valid, d * d, jnp.float32(0.0)))

    @pl.when(i == pl.num_programs(1) - 1)
    def _():
        if fold_final:
            # Single-split path: finish the cross-lane reduce (XLU slot is free
            # in the epilogue) and the 1/n scale in-kernel -> (1, 1) output.
            o_ref[...] = jnp.sum(acc_ref[...], keepdims=True) * jnp.float32(inv_n)
        else:
            # Per-split lane-wise partial sums (full 128-lane store).
            o_ref[...] = jnp.sum(acc_ref[...], axis=0, keepdims=True)


def _default_vmem_limit_bytes():
    """Generation-aware scoped-VMEM limit (v5e/v6e: 128 MiB phys, v7x: 64 MiB)."""
    try:
        cap = pltpu.get_tpu_info().vmem_capacity_bytes
    except Exception:  # be conservative if the query is unavailable
        cap = 64 * 1024 * 1024
    if cap >= 128 * 1024 * 1024:
        return 64 * 1024 * 1024        # v5e / v6e
    return 48 * 1024 * 1024            # v7x (64 MiB physical)


def mse_criterion(pred, target, *, block_rows_cap=None, vmem_limit_bytes=None):
    """Equivalent of torch.mean((pred - target) ** 2)."""
    assert pred.shape == target.shape, "pred/target shape mismatch"
    n = int(pred.size)

    p = jnp.ravel(pred)
    t = jnp.ravel(target)

    # Sub-32-bit dtypes pack along sublanes: align the (tiny) remainder pad and
    # the block rows to the packed multiple (8 f32 / 16 bf16 / 32 int8-fp8).
    itemsize = jnp.dtype(pred.dtype).itemsize
    pack = max(1, 4 // itemsize)
    row_mult = _SUBLANE * pack
    tile_elems = row_mult * _LANE
    rem = n % tile_elems
    if rem:
        pad = tile_elems - rem          # padded zeros contribute 0 to the sum
        p = jnp.pad(p, (0, pad))
        t = jnp.pad(t, (0, pad))

    rows = int(p.size) // _LANE         # multiple of row_mult
    p = p.reshape(rows, _LANE)
    t = t.reshape(rows, _LANE)

    if block_rows_cap is None:
        block_rows_cap = _DEFAULT_BLOCK_ROWS
    if vmem_limit_bytes is None:
        vmem_limit_bytes = _default_vmem_limit_bytes()

    block_rows = min(block_rows_cap, rows)      # multiple of row_mult
    num_blocks = -(-rows // block_rows)

    # Only enable the 2-way core split when it does not force a wasted
    # clamped-duplicate block DMA (or when one duplicate block is noise).
    if num_blocks >= 2 and (num_blocks % _NUM_SPLITS == 0 or num_blocks >= 8):
        splits = _NUM_SPLITS
    else:
        splits = 1
    blocks_per_split = -(-num_blocks // splits)
    fold_final = splits == 1

    def in_map(c, i):
        # Clamp so no block is ever fully out of bounds; clamped duplicates are
        # zeroed by the in-kernel masked path.
        return (jnp.minimum(c * blocks_per_split + i, num_blocks - 1), 0)

    kernel = functools.partial(
        _mse_kernel, total_rows=rows, blocks_per_split=blocks_per_split,
        fold_final=fold_final, inv_n=1.0 / n)

    if fold_final:
        out_shape = jax.ShapeDtypeStruct((1, 1), jnp.float32)
        out_spec = pl.BlockSpec((1, 1), lambda c, i: (0, 0))
        out_bytes = 4
    else:
        out_shape = jax.ShapeDtypeStruct((1, splits * _LANE), jnp.float32)
        out_spec = pl.BlockSpec((1, _LANE), lambda c, i: (0, c))
        out_bytes = splits * _LANE * 4

    # TODO(synk): sweep pipeline_mode=pl.Buffered(3) on the input specs on v7x.
    partial = pl.pallas_call(
        kernel,
        out_shape=out_shape,
        grid_spec=pltpu.PrefetchScalarGridSpec(
            num_scalar_prefetch=0,
            grid=(splits, blocks_per_split),
            in_specs=[
                pl.BlockSpec((block_rows, _LANE), in_map),
                pl.BlockSpec((block_rows, _LANE), in_map),
            ],
            out_specs=out_spec,
            scratch_shapes=[pltpu.VMEM((_SUBLANE, _LANE), jnp.float32)],
        ),
        compiler_params=pltpu.CompilerParams(
            # NOTE: on v7x verify in xprof that this axis lands on both
            # TensorCores; switch to pltpu.CORE_PARALLEL if it does not.
            dimension_semantics=("parallel", "arbitrary"),
            vmem_limit_bytes=vmem_limit_bytes,
        ),
        cost_estimate=pl.CostEstimate(
            flops=3 * n,
            transcendentals=0,
            bytes_accessed=2 * n * itemsize + out_bytes,
        ),
    )(p, t)

    if fold_final:
        return partial[0, 0]
    # Tiny JAX epilogue: combine the per-split lane partials + divide by true n.
    return jnp.sum(partial) / jnp.float32(n)


if __name__ == "__main__":
    key = jax.random.PRNGKey(0)

    def check(pred, target, **kw):
        result = mse_criterion(pred, target, **kw)
        jax.block_until_ready(result)
        ref = jnp.mean((pred.astype(jnp.float32) - target.astype(jnp.float32)) ** 2)
        assert jnp.allclose(result, ref, rtol=1e-5, atol=1e-6), (
            pred.shape, pred.dtype, result, ref)

    cases = [
        ((2, 4, 16, 16), jnp.float32, {}),    # spec-sized: 1 block, fused epilogue
        ((3, 5, 7, 11), jnp.float32, {}),     # ragged n -> remainder pad path
        ((3, 5, 7, 11), jnp.bfloat16, {}),    # bf16: in-kernel cast, 16-row pad
        ((8, 16, 64, 64), jnp.float32, {}),   # larger single block, hot path
        ((4, 8, 128, 128), jnp.float32, dict(block_rows_cap=128)),  # even 2-way split
        ((25, 25, 32, 32), jnp.float32, dict(block_rows_cap=64)),   # odd blocks: ragged tail + clamped dup
    ]
    for shape, dtype, kw in cases:
        key, k1, k2 = jax.random.split(key, 3)
        pred = jax.random.normal(k1, shape, dtype=jnp.float32).astype(dtype)
        target = jax.random.normal(k2, shape, dtype=jnp.float32).astype(dtype)
        check(pred, target, **kw)

    print("KERNEL_OK")
</pallas_src>

<mosaic_0001>
module attributes {stable_mosaic.version = 11 : i64} {
  func.func @_mse_kernel(%arg0: i32, %arg1: i32, %arg2: memref<16x128xf32, #tpu.memory_space<vmem>>, %arg3: memref<16x128xf32, #tpu.memory_space<vmem>>, %arg4: memref<1x1xf32, #tpu.memory_space<vmem>>, %arg5: memref<8x128xf32, #tpu.memory_space<vmem>>) attributes {dimension_semantics = [#tpu.dimension_semantics<parallel>, #tpu.dimension_semantics<arbitrary>], iteration_bounds = array<i64: 1, 1>, scalar_prefetch = 0 : i64, scratch_operands = 1 : i64, tpu.core_type = #tpu.core_type<tc>, window_params = [{transform_indices = @transform_0, window_bounds = array<i64: 16, 128>}, {transform_indices = @transform_1, window_bounds = array<i64: 16, 128>}, {pipeline_mode = #tpu.pipeline_mode<synchronous>, transform_indices = @transform_2, window_bounds = array<i64: 1, 1>}]} {
    %c0_i32 = arith.constant 0 : i32
    %0 = arith.cmpi eq, %arg1, %c0_i32 : i32
    %1 = arith.extui %0 : i1 to i32
    %c0_i32_0 = arith.constant 0 : i32
    %2 = arith.cmpi ne, %1, %c0_i32_0 : i32
    scf.if %2 {
      %cst = arith.constant 0.000000e+00 : f32
      %16 = vector.broadcast %cst : f32 to vector<8x128xf32>
      %c0 = arith.constant 0 : index
      %c0_7 = arith.constant 0 : index
      %17 = vector.load %arg5[%c0, %c0_7] : memref<8x128xf32, #tpu.memory_space<vmem>>, vector<8x128xf32>
      tpu.vector_store %arg5[%c0, %c0_7], %16 {strides = array<i32>} : memref<8x128xf32, #tpu.memory_space<vmem>>, vector<8x128xf32>,
    } else {
    }
    %c1_i32 = arith.constant 1 : i32
    %3 = arith.muli %arg0, %c1_i32 : i32
    %4 = arith.addi %3, %arg1 : i32
    %c16_i32 = arith.constant 16 : i32
    %5 = arith.muli %4, %c16_i32 : i32
    %c16_i32_1 = arith.constant 16 : i32
    %6 = arith.addi %5, %c16_i32_1 : i32
    %c16_i32_2 = arith.constant 16 : i32
    %7 = arith.cmpi sle, %6, %c16_i32_2 : i32
    %8 = arith.extui %7 : i1 to i32
    %c0_i32_3 = arith.constant 0 : i32
    %9 = arith.cmpi ne, %8, %c0_i32_3 : i32
    scf.if %9 {
      %c0 = arith.constant 0 : index
      %c0_7 = arith.constant 0 : index
      %16 = vector.load %arg2[%c0, %c0_7] : memref<16x128xf32, #tpu.memory_space<vmem>>, vector<16x128xf32>
      %c0_8 = arith.constant 0 : index
      %c0_9 = arith.constant 0 : index
      %17 = vector.load %arg3[%c0_8, %c0_9] : memref<16x128xf32, #tpu.memory_space<vmem>>, vector<16x128xf32>
      %18 = arith.subf %16, %17 : vector<16x128xf32>
      %19 = arith.mulf %18, %18 : vector<16x128xf32>
      %c0_10 = arith.constant 0 : index
      %c0_11 = arith.constant 0 : index
      %20 = vector.load %arg5[%c0_10, %c0_11] : memref<8x128xf32, #tpu.memory_space<vmem>>, vector<8x128xf32>
      %21 = vector.shape_cast %19 : vector<16x128xf32> to vector<2x8x128xf32>
      %cst = arith.constant dense<0.000000e+00> : vector<8x128xf32>
      %22 = vector.multi_reduction <add>, %21, %cst [0] : vector<2x8x128xf32> to vector<8x128xf32>
      %23 = arith.addf %20, %22 : vector<8x128xf32>
      %c0_12 = arith.constant 0 : index
      %c0_13 = arith.constant 0 : index
      %24 = vector.load %arg5[%c0_12, %c0_13] : memref<8x128xf32, #tpu.memory_space<vmem>>, vector<8x128xf32>
      tpu.vector_store %arg5[%c0_12, %c0_13], %23 {strides = array<i32>} : memref<8x128xf32, #tpu.memory_space<vmem>>, vector<8x128xf32>,
    } else {
    }
    %true = arith.constant true
    %10 = arith.xori %7, %true : i1
    %11 = arith.extui %10 : i1 to i32
    %c0_i32_4 = arith.constant 0 : i32
    %12 = arith.cmpi ne, %11, %c0_i32_4 : i32
    scf.if %12 {
      %c16_i32_7 = arith.constant 16 : i32
      %16 = arith.subi %c16_i32_7, %5 : i32
      %17 = tpu.iota {dimensions = array<i32: 0>} : vector<16x128xi32>
      %18 = vector.broadcast %16 : i32 to vector<16x128xi32>
      %19 = arith.cmpi slt, %17, %18 : vector<16x128xi32>
      %c0 = arith.constant 0 : index
      %c0_8 = arith.constant 0 : index
      %20 = vector.load %arg2[%c0, %c0_8] : memref<16x128xf32, #tpu.memory_space<vmem>>, vector<16x128xf32>
      %c0_9 = arith.constant 0 : index
      %c0_10 = arith.constant 0 : index
      %21 = vector.load %arg3[%c0_9, %c0_10] : memref<16x128xf32, #tpu.memory_space<vmem>>, vector<16x128xf32>
      %22 = arith.subf %20, %21 : vector<16x128xf32>
      %23 = arith.mulf %22, %22 : vector<16x128xf32>
      %cst = arith.constant 0.000000e+00 : f32
      %24 = vector.broadcast %cst : f32 to vector<16x128xf32>
      %25 = arith.select %19, %23, %24 : vector<16x128xi1>, vector<16x128xf32>
      %c0_11 = arith.constant 0 : index
      %c0_12 = arith.constant 0 : index
      %26 = vector.load %arg5[%c0_11, %c0_12] : memref<8x128xf32, #tpu.memory_space<vmem>>, vector<8x128xf32>
      %27 = vector.shape_cast %25 : vector<16x128xf32> to vector<2x8x128xf32>
      %cst_13 = arith.constant dense<0.000000e+00> : vector<8x128xf32>
      %28 = vector.multi_reduction <add>, %27, %cst_13 [0] : vector<2x8x128xf32> to vector<8x128xf32>
      %29 = arith.addf %26, %28 : vector<8x128xf32>
      %c0_14 = arith.constant 0 : index
      %c0_15 = arith.constant 0 : index
      %30 = vector.load %arg5[%c0_14, %c0_15] : memref<8x128xf32, #tpu.memory_space<vmem>>, vector<8x128xf32>
      tpu.vector_store %arg5[%c0_14, %c0_15], %29 {strides = array<i32>} : memref<8x128xf32, #tpu.memory_space<vmem>>, vector<8x128xf32>,
    } else {
    }
    %c0_i32_5 = arith.constant 0 : i32
    %13 = arith.cmpi eq, %arg1, %c0_i32_5 : i32
    %14 = arith.extui %13 : i1 to i32
    %c0_i32_6 = arith.constant 0 : i32
    %15 = arith.cmpi ne, %14, %c0_i32_6 : i32
    scf.if %15 {
      %c0 = arith.constant 0 : index
      %c0_7 = arith.constant 0 : index
      %16 = vector.load %arg5[%c0, %c0_7] : memref<8x128xf32, #tpu.memory_space<vmem>>, vector<8x128xf32>
      %17 = vector.shape_cast %16 : vector<8x128xf32> to vector<1x8x128xf32>
      %cst = arith.constant dense<0.000000e+00> : vector<1xf32>
      %18 = vector.multi_reduction <add>, %17, %cst [1, 2] : vector<1x8x128xf32> to vector<1xf32>
      %19 = vector.shape_cast %18 : vector<1xf32> to vector<1x1x1xf32>
      %20 = vector.extract %19[0, 0, 0] : f32 from vector<1x1x1xf32>
      %21 = vector.broadcast %20 : f32 to vector<1x1xf32>
      %cst_8 = arith.constant 4.8828125E-4 : f32
      %22 = vector.broadcast %cst_8 : f32 to vector<1x1xf32>
      %23 = arith.mulf %21, %22 : vector<1x1xf32>
      %c0_9 = arith.constant 0 : index
      %c0_10 = arith.constant 0 : index
      %24 = vector.load %arg4[%c0_9, %c0_10] : memref<1x1xf32, #tpu.memory_space<vmem>>, vector<1x1xf32>
      tpu.vector_store %arg4[%c0_9, %c0_10], %23 {strides = array<i32>} : memref<1x1xf32, #tpu.memory_space<vmem>>, vector<1x1xf32>,
    } else {
    }
    return
  }
  func.func @transform_0(%arg0: i32, %arg1: i32) -> (i32, i32) {
    %c1_i32 = arith.constant 1 : i32
    %0 = arith.muli %arg0, %c1_i32 : i32
    %1 = arith.addi %0, %arg1 : i32
    %c0_i32 = arith.constant 0 : i32
    %2 = arith.minsi %1, %c0_i32 : i32
    %c0_i32_0 = arith.constant 0 : i32
    %c0_i32_1 = arith.constant 0 : i32
    return %2, %c0_i32_0 : i32, i32
  }
  func.func @transform_1(%arg0: i32, %arg1: i32) -> (i32, i32) {
    %c1_i32 = arith.constant 1 : i32
    %0 = arith.muli %arg0, %c1_i32 : i32
    %1 = arith.addi %0, %arg1 : i32
    %c0_i32 = arith.constant 0 : i32
    %2 = arith.minsi %1, %c0_i32 : i32
    %c0_i32_0 = arith.constant 0 : i32
    %c0_i32_1 = arith.constant 0 : i32
    return %2, %c0_i32_0 : i32, i32
  }
  func.func @transform_2(%arg0: i32, %arg1: i32) -> (i32, i32) {
    %c0_i32 = arith.constant 0 : i32
    %c0_i32_0 = arith.constant 0 : i32
    %c0_i32_1 = arith.constant 0 : i32
    return %c0_i32, %c0_i32_0 : i32, i32
  }
}

</mosaic_0001>

<llo_original>
// kernel: tpu_custom_call.1
$region0: #{tpu_custom_call.1}
  #allocation0 [shape = 'u32[]', space=smem, size = 0x4, offset = 0x4, fixed_abs, tag = 'smem constant byte address 0x4 - core index']
  #allocation1 [shape = 'u32[72,128]{1,0:T(1,128)}', space=vmem, size = 0x9000, scoped, tag = 'internal scratch']
  #allocation2 [shape = 'f32[8,128]{1,0:T(8,128)}', space=vmem, size = 0x1000, scoped, tag = 'scratch operand']
  %s0 = inlined_call_operand.hbm [shape: f32[16,128], index: 0, kind: input, shape index: {}]
  %s1 = inlined_call_operand.hbm [shape: f32[16,128], index: 1, kind: input, shape index: {}]
  %s2 = inlined_call_operand.hbm [shape: f32[1,1], index: 2, kind: output, shape index: {}]
  %s3 = sld [smem:[#allocation0]]
  $region42: #{tpu_custom_call.1} parent=0
    _
  %s5 = ssub.s32 1, %s3
  %s6 = scalar_select 0, %s5, %s3
  $region1: #{tpu_custom_call.1} parent=0
    #allocation3 [shape = 'u8[8192]{0}', space=vmem, size = 0x2000, scoped, tag = 'input window, operand 0, single buffered']
    #allocation4 [shape = 's32[1]{0}', space=sflag, size = 0x4, scoped, tag = 'scoped memory for tpu_custom_call.1']
    #allocation5 [shape = 's32[1]{0}', space=sflag, size = 0x4, scoped, tag = 'scoped memory for tpu_custom_call.1']
    #allocation6 [shape = 'u8[8192]{0}', space=vmem, size = 0x2000, scoped, tag = 'input window, operand 1, single buffered']
    #allocation7 [shape = 's32[1]{0}', space=sflag, size = 0x4, scoped, tag = 'scoped memory for tpu_custom_call.1']
    #allocation8 [shape = 'u8[512]{0}', space=vmem, size = 0x400, scoped, tag = 'output window, operand 0, single buffered']
    %7 = vsyncpa [#allocation4], 0
    %8 = vsyncpa [#allocation7], 0
    %9 = vsyncpa [#allocation5], 0
    // Predicated region
    $region2: #{tpu_custom_call.1} parent=1 // pred_check
      _
    $region3: #{tpu_custom_call.1} parent=1 // pred_check_branch
      %11 = sbr.rel (0) target = $region5
    $region4: #{tpu_custom_call.1} parent=1 // pred_region
      %s12 = sadd.s32 0, 0
      %p13 = scmp.lt.s32.totalorder %s12, 0
      %s14 = scalar_select %p13, %s12, 0
      %s15 = smul.u32 2, %s14
      %17 = vsyncadd [#allocation4], 0
      %s18 = smul.addr %s15, 8
      %s19 = scalar_lea.hbm %s0, %s18
      %s20 = sshll.u32 %s19, 4
      %s21 = int_to_ptr.hbm [resolvable:$true] %s20
      %s22 = sshll.u32 [#allocation3], 4
      %s23 = int_to_ptr.vmem [resolvable:$true] %s22
      %28 = dma.hbm_to_vmem [thread:$0]  %s21, 256, %s23, [#allocation4], 128, 128, 8
    $region5: #{tpu_custom_call.1} parent=1 // pred_fallthru
      _
    // Predicated region
    $region6: #{tpu_custom_call.1} parent=1 // pred_check
      _
    $region7: #{tpu_custom_call.1} parent=1 // pred_check_branch
      %30 = sbr.rel (0) target = $region9
    $region8: #{tpu_custom_call.1} parent=1 // pred_region
      %s31 = sadd.s32 0, 0
      %p32 = scmp.lt.s32.totalorder %s31, 0
      %s33 = scalar_select %p32, %s31, 0
      %s34 = smul.u32 2, %s33
      %36 = vsyncadd [#allocation7], 0
      %s37 = smul.addr %s34, 8
      %s38 = scalar_lea.hbm %s1, %s37
      %s39 = sshll.u32 %s38, 4
      %s40 = int_to_ptr.hbm [resolvable:$true] %s39
      %s41 = sshll.u32 [#allocation6], 4
      %s42 = int_to_ptr.vmem [resolvable:$true] %s41
      %47 = dma.hbm_to_vmem [thread:$0]  %s40, 256, %s42, [#allocation7], 128, 128, 8
    $region9: #{tpu_custom_call.1} parent=1 // pred_fallthru
      _
    // Predicated region
    $region10: #{tpu_custom_call.1} parent=1 // pred_check
      _
    $region11: #{tpu_custom_call.1} parent=1 // pred_check_branch
      %49 = sbr.rel (0) target = $region13
    $region12: #{tpu_custom_call.1} parent=1 // pred_region
      %51 = dma.done [#allocation4], 256
    $region13: #{tpu_custom_call.1} parent=1 // pred_fallthru
      _
    // Predicated region
    $region14: #{tpu_custom_call.1} parent=1 // pred_check
      _
    $region15: #{tpu_custom_call.1} parent=1 // pred_check_branch
      %53 = sbr.rel (0) target = $region17
    $region16: #{tpu_custom_call.1} parent=1 // pred_region
      %55 = dma.done [#allocation7], 256
    $region17: #{tpu_custom_call.1} parent=1 // pred_fallthru
      _
    %s56 = sadd.s32 0, 0
    %p57 = scmp.lt.s32.totalorder %s56, 0
    %s58 = scalar_select %p57, %s56, 0
    %s59 = smul.u32 2, %s58
    %s60 = sadd.s32 0, 0
    %p61 = scmp.lt.s32.totalorder %s60, 0
    %s62 = scalar_select %p61, %s60, 0
    %s63 = smul.u32 2, %s62
    %p64 = scmp.eq.s32.totalorder 0, 0
    // Predicated region
    $region18: #{tpu_custom_call.1} parent=1 // pred_check
      %p65 = pneg %p64
    $region19: #{tpu_custom_call.1} parent=1 // pred_check_branch
      %67 = sbr.rel (%p65) target = $region21
    $region20: #{tpu_custom_call.1} parent=1 // pred_region
      %68 = vst [vmem:[#allocation2] sm:$0xff] 0.0
    $region21: #{tpu_custom_call.1} parent=1 // pred_fallthru
      _
    %s69 = sadd.s32 0, 0
    %s70 = smul.u32 %s69, 16
    %s71 = sadd.s32 %s70, 16
    %p72 = scmp.le.s32.totalorder %s71, 16
    // Predicated region
    $region22: #{tpu_custom_call.1} parent=1 // pred_check
      %p73 = pneg %p72
    $region23: #{tpu_custom_call.1} parent=1 // pred_check_branch
      %75 = sbr.rel (%p73) target = $region25
    $region24: #{tpu_custom_call.1} parent=1 // pred_region
      %v76 = vld [vmem:[#allocation3] sm:$0xff]
      %v77 = vld [vmem:[#allocation3 + $0x8] sm:$0xff]
      %v78 = vld [vmem:[#allocation6] sm:$0xff]
      %v79 = vld [vmem:[#allocation6 + $0x8] sm:$0xff]
      %v80 = vsub.f32 %v76, %v78
      %v81 = vsub.f32 %v77, %v79
      %v82 = vmul.f32 %v80, %v80
      %v83 = vmul.f32 %v81, %v81
      %v84 = vld [vmem:[#allocation2] sm:$0xff]
      %v85 = vadd.f32 %v82, %v83
      %v86 = vadd.f32 %v84, %v85
      %87 = vst [vmem:[#allocation2] sm:$0xff] %v86
    $region25: #{tpu_custom_call.1} parent=1 // pred_fallthru
      _
    %p88 = scmp.gt.s32.totalorder %s71, 16
    // Predicated region
    $region26: #{tpu_custom_call.1} parent=1 // pred_check
      %p89 = pneg %p88
    $region27: #{tpu_custom_call.1} parent=1 // pred_check_branch
      %91 = sbr.rel (%p89) target = $region29
    $region28: #{tpu_custom_call.1} parent=1 // pred_region
      %s92 = ssub.s32 16, %s70
      %v93 = vlaneseq
      %v94 = vshrl.u32 %v93, 7
      %v95 = vadd.s32 %v94, 8
      %v96 = vstv %s92
      %vm97 = vcmp.lt.s32.totalorder %v94, %v96
      %vm98 = vcmp.lt.s32.totalorder %v95, %v96
      %v99 = vld [vmem:[#allocation3] sm:$0xff]
      %v100 = vld [vmem:[#allocation3 + $0x8] sm:$0xff]
      %v101 = vld [vmem:[#allocation6] sm:$0xff]
      %v102 = vld [vmem:[#allocation6 + $0x8] sm:$0xff]
      %v103 = vsub.f32 %v99, %v101
      %v104 = vsub.f32 %v100, %v102
      %v105 = vmul.f32 %v103, %v103
      %v106 = vmul.f32 %v104, %v104
      %v107 = vsel %vm97, %v105, 0.0
      %v108 = vsel %vm98, %v106, 0.0
      %v109 = vld [vmem:[#allocation2] sm:$0xff]
      %v110 = vadd.f32 %v107, %v108
      %v111 = vadd.f32 %v109, %v110
      %112 = vst [vmem:[#allocation2] sm:$0xff] %v111
    $region29: #{tpu_custom_call.1} parent=1 // pred_fallthru
      _
    // Predicated region
    $region30: #{tpu_custom_call.1} parent=1 // pred_check
      %p113 = pneg %p64
    $region31: #{tpu_custom_call.1} parent=1 // pred_check_branch
      %115 = sbr.rel (%p113) target = $region33
    $region32: #{tpu_custom_call.1} parent=1 // pred_region
      %v116 = vld [vmem:[#allocation2] sm:$0xff]
      %117 = vadd.xlane.f32.xlu0 %v116
      %v118 = vpop.xlane.xlu0 %117
      %v119 = vrot.slane %v118, 4
      %v120 = vadd.f32 %v118, %v119
      %v121 = vrot.slane %v120, 2
      %v122 = vadd.f32 %v120, %v121
      %v123 = vrot.slane %v122, 1
      %v124 = vadd.f32 %v122, %v123
      %s125 = vtos %v124
      %v126 = vstv %s125
      %v127 = vmul.f32 %v126, 0.00048828125
      %vm128 = vcmask 0
      %129 = vst.msk [vmem:[#allocation8] sm:$0x1] %vm128, %v127
    $region33: #{tpu_custom_call.1} parent=1 // pred_fallthru
      _
    // Predicated region
    $region34: #{tpu_custom_call.1} parent=1 // pred_check
      _
    $region35: #{tpu_custom_call.1} parent=1 // pred_check_branch
      %131 = sbr.rel (0) target = $region37
    $region36: #{tpu_custom_call.1} parent=1 // pred_region
      %133 = vsyncadd [#allocation5], 0
      %s135 = sshll.u32 [#allocation8], 4
      %s136 = int_to_ptr.vmem [resolvable:$true] %s135
      %s137 = sshll.u32 %s2, 4
      %s138 = int_to_ptr.hbm [resolvable:$true] %s137
      %140 = dma.vmem_to_hbm [thread:$0]  %s136, 16, %s138, [#allocation5]
    $region37: #{tpu_custom_call.1} parent=1 // pred_fallthru
      _
    // Predicated region
    $region38: #{tpu_custom_call.1} parent=1 // pred_check
      _
    $region39: #{tpu_custom_call.1} parent=1 // pred_check_branch
      %142 = sbr.rel (0) target = $region41
    $region40: #{tpu_custom_call.1} parent=1 // pred_region
      %144 = dma.done [#allocation5], 16
    $region41: #{tpu_custom_call.1} parent=1 // pred_fallthru
      _
    %145 = vsyncpa [#allocation4], 1
    %146 = vsyncpa [#allocation7], 1
    %147 = vsyncpa [#allocation5], 1

</llo_original>
